<compile_context>
chip_gen: v6e
topology: v6e:2x2x1
jax: 0.10.0
libtpu: 0.0.40
codegen_flags: <defaults>
</compile_context>

<pallas_src>
import jax
import jax.numpy as jnp
from jax.experimental import pallas as pl
from jax.experimental.pallas import tpu as pltpu


def _fused_fusion_classify_kernel(
    t_ref,     # (Bt, Sp, Dtp)  bf16  text embeddings (padded)
    a_ref,     # (Bt, Lp, Dap)  bf16  audio embeddings (padded)
    m_ref,     # (Bt, 1,  Lp)   f32   additive attention mask (1 - audio_mask;
               #                      wrapper-padded key positions = -1e30)
    qm_ref,    # (Sp, 1)        f32   query-row mask (0 for wrapper-padded S rows)
    wq_ref,    # (Dtp, Dap)     bf16  folded Q weight = ((Wq @ Wfc).T) / sqrt(Da)
    bq_ref,    # (1, Dap)       f32   folded Q bias   = (Wq @ bfc + bq) / sqrt(Da)
    wkv_ref,   # (Dap, 2*Dap)   bf16  fused [Wk.T | Wv.T]
    bkv_ref,   # (1, 2*Dap)     f32   fused [bk | bv]
    wco_ref,   # (Dap, Cp)      bf16  folded classifier = ((Wc @ Wo)/S).T
    bco_ref,   # (1, Cp)        f32   folded classifier bias = Wc @ bo + bc
    out_ref,   # (Bt, 1, Cp)    f32
):
    f32 = jnp.float32
    bf16 = jnp.bfloat16
    Bt, Sp, Dtp = t_ref.shape
    _, Lp, Dap = a_ref.shape

    # ---- Q projection (fc + 1/sqrt(Da) folded), single flattened bf16 GEMM ----
    t2 = t_ref[...].reshape(Bt * Sp, Dtp)
    q = jnp.dot(t2, wq_ref[...], preferred_element_type=f32) + bq_ref[...]
    q = q.reshape(Bt, Sp, Dap)

    # ---- fused K/V projection, single flattened bf16 GEMM ----
    a2 = a_ref[...].reshape(Bt * Lp, Dap)
    kv = jnp.dot(a2, wkv_ref[...], preferred_element_type=f32) + bkv_ref[...]
    kv = kv.reshape(Bt, Lp, 2 * Dap)
    k = kv[:, :, :Dap]          # lane-aligned split (Dap % 128 == 0)
    v = kv[:, :, Dap:]

    # ---- single-head attention scores (scale pre-folded into Q) ----
    scores = jnp.einsum("bsd,bld->bsl", q.astype(bf16), k.astype(bf16),
                        preferred_element_type=f32)
    # PyTorch float attn_mask is *added* to the scores ( = 1 - audio_mask ),
    # broadcast over the query axis, exactly mirroring the module.
    scores = scores + m_ref[...]

    # numerically stable softmax over keys (f32); denominator via EUP rcp
    s_max = jnp.max(scores, axis=-1, keepdims=True)
    p = jnp.exp(scores - s_max)
    inv = pl.reciprocal(jnp.sum(p, axis=-1, keepdims=True), approx=True)  # (Bt,Sp,1)

    # ---- mean pool over S folded through the value contraction ----
    # pooled_d = sum_s sum_l softmax[s,l] * v[l,d]   (1/S folded in classifier).
    # Query rows that only exist because of wrapper padding are zeroed by qmask.
    w = inv * qm_ref[...][None]                    # (Bt, Sp, 1) per-row weight
    ps = jnp.sum(p * w, axis=1)                    # (Bt, Lp)
    pooled = jnp.sum(ps[:, :, None] * v, axis=1)   # (Bt, Dap)

    # ---- out_proj + mean(1/S) folded into the classifier ----
    logits = jnp.dot(pooled.astype(bf16), wco_ref[...],
                     preferred_element_type=f32) + bco_ref[...]
    out_ref[...] = logits[:, None, :]              # (Bt, 1, Cp), full-lane store


def _round_up(x, m):
    return (x + m - 1) // m * m


def text_audio_sentiment_classify_forward(
    text_embedding,    # (B, S, Dt) f32
    audio_embedding,   # (B, L, Da) f32
    audio_mask,        # (B, L)     f32  (1 = valid, 0 = pad)
    params,            # dict of weights (see init_params)
    *,
    batch_tile=16,     # multiple of 8; re-derive smaller for v7x (64 MiB VMEM)
):
    f32, bf16 = jnp.float32, jnp.bfloat16
    B, S, Dt = text_embedding.shape
    _, L, Da = audio_embedding.shape
    C = params["wc"].shape[0]

    # ---------- host-side algebraic weight folding (one-time, f32) ----------
    # fc folded into Q, plus the 1/sqrt(Da) attention scale:
    #   q = ((t @ Wfc.T + bfc) @ Wq.T + bq) / sqrt(Da)
    scale = 1.0 / jnp.sqrt(jnp.float32(Da))
    wq_t = (params["wq"] @ params["wfc"]).T * scale                # (Dt, Da)
    bq_f = (params["wq"] @ params["bfc"] + params["bq"]) * scale   # (Da,)
    # out_proj + mean(1/S) folded into the classifier
    wco = (params["wc"] @ params["wo"]) / jnp.float32(S)           # (C, Da)
    bco = params["wc"] @ params["bo"] + params["bc"]               # (C,)

    # ---------- lane / sublane alignment padding ----------
    Dtp, Dap = _round_up(Dt, 128), _round_up(Da, 128)
    Sp, Lp = _round_up(S, 8), _round_up(L, 8)
    Cp = _round_up(C, 128)

    pad2 = lambda a, r, c: jnp.pad(a, ((0, r - a.shape[0]), (0, c - a.shape[1])))
    wq_p = pad2(wq_t, Dtp, Dap)
    wkv_p = jnp.concatenate(
        [pad2(params["wk"].T, Dap, Dap), pad2(params["wv"].T, Dap, Dap)], axis=1)
    bq_p = jnp.pad(bq_f, (0, Dap - Da)).reshape(1, Dap)
    bkv_p = jnp.concatenate(
        [jnp.pad(params["bk"], (0, Dap - Da)),
         jnp.pad(params["bv"], (0, Dap - Da))]).reshape(1, 2 * Dap)
    wco_p = pad2(wco.T, Dap, Cp)
    bco_p = jnp.pad(bco, (0, Cp - C)).reshape(1, Cp)

    # ---------- batch tiling ----------
    # >= 2 grid steps whenever B >= 2 so both v7x TensorCores get work;
    # larger (multiple-of-8) tiles for big B to amortize per-step overhead.
    if B > batch_tile:
        Bt = batch_tile
    elif B >= 2:
        Bt = max(1, B // 2)
    else:
        Bt = B
    Bp = _round_up(B, Bt)

    # ---------- activation padding + bf16 cast (halves HBM->VMEM bytes) ----------
    t = jnp.pad(text_embedding,
                ((0, Bp - B), (0, Sp - S), (0, Dtp - Dt))).astype(bf16)
    a = jnp.pad(audio_embedding,
                ((0, Bp - B), (0, Lp - L), (0, Dap - Da))).astype(bf16)
    # Additive float attn_mask exactly as the module builds it (1 - audio_mask);
    # wrapper-added key positions get a large negative so they carry no mass.
    add_mask = (1.0 - audio_mask).astype(f32)
    add_mask = jnp.pad(add_mask, ((0, Bp - B), (0, Lp - L)),
                       constant_values=-1e30)[:, None, :]          # (Bp, 1, Lp)
    # Query-row mask: wrapper-added S rows are excluded from the mean pool.
    qmask = jnp.zeros((Sp, 1), f32).at[:S, :].set(1.0)

    grid = (Bp // Bt,)
    # Grid-constant operands: fetch once, single-buffered (half the VMEM).
    wspec = lambda shp: pl.BlockSpec(shp, lambda b: (0, 0),
                                     pipeline_mode=pl.Buffered(1))

    out = pl.pallas_call(
        _fused_fusion_classify_kernel,
        out_shape=jax.ShapeDtypeStruct((Bp, 1, Cp), f32),
        grid_spec=pltpu.PrefetchScalarGridSpec(
            num_scalar_prefetch=0,
            grid=grid,
            in_specs=[
                pl.BlockSpec((Bt, Sp, Dtp), lambda b: (b, 0, 0)),
                pl.BlockSpec((Bt, Lp, Dap), lambda b: (b, 0, 0)),
                pl.BlockSpec((Bt, 1, Lp), lambda b: (b, 0, 0)),
                wspec((Sp, 1)),
                wspec((Dtp, Dap)),
                wspec((1, Dap)),
                wspec((Dap, 2 * Dap)),
                wspec((1, 2 * Dap)),
                wspec((Dap, Cp)),
                wspec((1, Cp)),
            ],
            out_specs=pl.BlockSpec((Bt, 1, Cp), lambda b: (b, 0, 0)),
        ),
        compiler_params=pltpu.CompilerParams(
            dimension_semantics=("parallel",),
            vmem_limit_bytes=64 * 1024 * 1024,
        ),
    )(
        t, a, add_mask, qmask,
        wq_p.astype(bf16), bq_p,
        wkv_p.astype(bf16), bkv_p,
        wco_p.astype(bf16), bco_p,
    )
    return out[:B, 0, :C]


def init_params(key, text_dim, audio_dim, num_classes):
    ks = jax.random.split(key, 12)
    scale = 0.05
    return {
        "wfc": scale * jax.random.normal(ks[0], (audio_dim, text_dim), jnp.float32),
        "bfc": scale * jax.random.normal(ks[1], (audio_dim,), jnp.float32),
        "wq":  scale * jax.random.normal(ks[2], (audio_dim, audio_dim), jnp.float32),
        "bq":  scale * jax.random.normal(ks[3], (audio_dim,), jnp.float32),
        "wk":  scale * jax.random.normal(ks[4], (audio_dim, audio_dim), jnp.float32),
        "bk":  scale * jax.random.normal(ks[5], (audio_dim,), jnp.float32),
        "wv":  scale * jax.random.normal(ks[6], (audio_dim, audio_dim), jnp.float32),
        "bv":  scale * jax.random.normal(ks[7], (audio_dim,), jnp.float32),
        "wo":  scale * jax.random.normal(ks[8], (audio_dim, audio_dim), jnp.float32),
        "bo":  scale * jax.random.normal(ks[9], (audio_dim,), jnp.float32),
        "wc":  scale * jax.random.normal(ks[10], (num_classes, audio_dim), jnp.float32),
        "bc":  scale * jax.random.normal(ks[11], (num_classes,), jnp.float32),
    }


def _reference_forward(text_embedding, audio_embedding, audio_mask, p):
    """Pure-JAX f32 reference mirroring the PyTorch feature_fusion + fc (unfolded)."""
    tq = jnp.einsum("bsd,ed->bse", text_embedding, p["wfc"]) + p["bfc"]
    da = tq.shape[-1]
    q = jnp.einsum("bse,fe->bsf", tq, p["wq"]) + p["bq"]
    k = jnp.einsum("ble,fe->blf", audio_embedding, p["wk"]) + p["bk"]
    v = jnp.einsum("ble,fe->blf", audio_embedding, p["wv"]) + p["bv"]
    scores = jnp.einsum("bsf,blf->bsl", q, k) / jnp.sqrt(jnp.float32(da))
    scores = scores + (1.0 - audio_mask)[:, None, :]
    attn = jax.nn.softmax(scores, axis=-1)
    ctx = jnp.einsum("bsl,blf->bsf", attn, v)
    out = jnp.einsum("bsf,gf->bsg", ctx, p["wo"]) + p["bo"]
    pooled = jnp.mean(out, axis=1)
    return jnp.einsum("bf,cf->bc", pooled, p["wc"]) + p["bc"]


if __name__ == "__main__":
    # TODO(synk): BERT/intern-LM text encoder and emotion2vec audio encoder are
    # external pretrained checkpoints; their outputs are synthesized as inputs.
    B = 2            # batch
    S = 8            # text segment length (query positions)
    L = 16           # audio sequence length (key/value positions)
    Dt = 32          # args.text_embedding_dim
    Da = 32          # args.audio_embedding_dim
    C = 4            # args.num_classes

    key = jax.random.PRNGKey(0)
    k_t, k_a, k_m, k_p = jax.random.split(key, 4)

    text_embedding = jax.random.normal(k_t, (B, S, Dt), jnp.float32)
    audio_embedding = jax.random.normal(k_a, (B, L, Da), jnp.float32)
    # audio_padded_type: 1 = valid, 0 = padding (float mask as in the module)
    audio_mask = (jax.random.uniform(k_m, (B, L)) > 0.25).astype(jnp.float32)

    params = init_params(k_p, Dt, Da, C)

    out = text_audio_sentiment_classify_forward(
        text_embedding, audio_embedding, audio_mask, params
    )
    out = jax.block_until_ready(out)

    ref = _reference_forward(text_embedding, audio_embedding, audio_mask, params)
    assert out.shape == (B, C)
    # Tolerance covers bf16 GEMM inputs, the EUP approx-reciprocal softmax
    # denominator and fp reassociation from the host-side weight folding.
    assert jnp.allclose(out, ref, atol=5e-3, rtol=5e-3), (out, ref)

    print("KERNEL_OK")
</pallas_src>

<mosaic_0001>
module attributes {stable_mosaic.version = 11 : i64} {
  func.func @_fused_fusion_classify_kernel(%arg0: i32, %arg1: memref<1x8x128xbf16, #tpu.memory_space<vmem>>, %arg2: memref<1x16x128xbf16, #tpu.memory_space<vmem>>, %arg3: memref<1x1x16xf32, #tpu.memory_space<vmem>>, %arg4: memref<8x1xf32, #tpu.memory_space<vmem>>, %arg5: memref<128x128xbf16, #tpu.memory_space<vmem>>, %arg6: memref<1x128xf32, #tpu.memory_space<vmem>>, %arg7: memref<128x256xbf16, #tpu.memory_space<vmem>>, %arg8: memref<1x256xf32, #tpu.memory_space<vmem>>, %arg9: memref<128x128xbf16, #tpu.memory_space<vmem>>, %arg10: memref<1x128xf32, #tpu.memory_space<vmem>>, %arg11: memref<1x1x128xf32, #tpu.memory_space<vmem>>) attributes {dimension_semantics = [#tpu.dimension_semantics<parallel>], iteration_bounds = array<i64: 2>, scalar_prefetch = 0 : i64, scratch_operands = 0 : i64, tpu.core_type = #tpu.core_type<tc>, window_params = [{transform_indices = @transform_0, window_bounds = array<i64: 1, 8, 128>}, {transform_indices = @transform_1, window_bounds = array<i64: 1, 16, 128>}, {transform_indices = @transform_2, window_bounds = array<i64: 1, 1, 16>}, {pipeline_mode = #tpu.pipeline_mode<synchronous>, transform_indices = @transform_3, window_bounds = array<i64: 8, 1>}, {pipeline_mode = #tpu.pipeline_mode<synchronous>, transform_indices = @transform_4, window_bounds = array<i64: 128, 128>}, {pipeline_mode = #tpu.pipeline_mode<synchronous>, transform_indices = @transform_5, window_bounds = array<i64: 1, 128>}, {pipeline_mode = #tpu.pipeline_mode<synchronous>, transform_indices = @transform_6, window_bounds = array<i64: 128, 256>}, {pipeline_mode = #tpu.pipeline_mode<synchronous>, transform_indices = @transform_7, window_bounds = array<i64: 1, 256>}, {pipeline_mode = #tpu.pipeline_mode<synchronous>, transform_indices = @transform_8, window_bounds = array<i64: 128, 128>}, {pipeline_mode = #tpu.pipeline_mode<synchronous>, transform_indices = @transform_9, window_bounds = array<i64: 1, 128>}, {transform_indices = @transform_10, window_bounds = array<i64: 1, 1, 128>}]} {
    %c0 = arith.constant 0 : index
    %c0_0 = arith.constant 0 : index
    %c0_1 = arith.constant 0 : index
    %0 = vector.load %arg1[%c0, %c0_0, %c0_1] : memref<1x8x128xbf16, #tpu.memory_space<vmem>>, vector<1x8x128xbf16>
    %1 = vector.shape_cast %0 : vector<1x8x128xbf16> to vector<8x128xbf16>
    %c0_2 = arith.constant 0 : index
    %c0_3 = arith.constant 0 : index
    %2 = vector.load %arg5[%c0_2, %c0_3] : memref<128x128xbf16, #tpu.memory_space<vmem>>, vector<128x128xbf16>
    %cst = arith.constant dense<0.000000e+00> : vector<8x128xf32>
    %3 = tpu.matmul %1, %2, %cst {dimension_numbers = #tpu.dot_dimension_numbers<[1], [0], [0], [1], [0, 0, 1, 1], [], []>} : vector<8x128xbf16>, vector<128x128xbf16>, vector<8x128xf32> -> vector<8x128xf32>
    %c0_4 = arith.constant 0 : index
    %c0_5 = arith.constant 0 : index
    %4 = vector.load %arg6[%c0_4, %c0_5] : memref<1x128xf32, #tpu.memory_space<vmem>>, vector<1x128xf32>
    %5 = vector.broadcast %4 : vector<1x128xf32> to vector<8x128xf32>
    %6 = arith.addf %3, %5 : vector<8x128xf32>
    %7 = vector.shape_cast %6 : vector<8x128xf32> to vector<1x8x128xf32>
    %c0_6 = arith.constant 0 : index
    %c0_7 = arith.constant 0 : index
    %c0_8 = arith.constant 0 : index
    %8 = vector.load %arg2[%c0_6, %c0_7, %c0_8] : memref<1x16x128xbf16, #tpu.memory_space<vmem>>, vector<1x16x128xbf16>
    %9 = vector.shape_cast %8 : vector<1x16x128xbf16> to vector<16x128xbf16>
    %c0_9 = arith.constant 0 : index
    %c0_10 = arith.constant 0 : index
    %10 = vector.load %arg7[%c0_9, %c0_10] : memref<128x256xbf16, #tpu.memory_space<vmem>>, vector<128x256xbf16>
    %cst_11 = arith.constant dense<0.000000e+00> : vector<16x256xf32>
    %11 = tpu.matmul %9, %10, %cst_11 {dimension_numbers = #tpu.dot_dimension_numbers<[1], [0], [0], [1], [0, 0, 1, 1], [], []>} : vector<16x128xbf16>, vector<128x256xbf16>, vector<16x256xf32> -> vector<16x256xf32>
    %c0_12 = arith.constant 0 : index
    %c0_13 = arith.constant 0 : index
    %12 = vector.load %arg8[%c0_12, %c0_13] : memref<1x256xf32, #tpu.memory_space<vmem>>, vector<1x256xf32>
    %13 = vector.broadcast %12 : vector<1x256xf32> to vector<16x256xf32>
    %14 = arith.addf %11, %13 : vector<16x256xf32>
    %15 = vector.shape_cast %14 : vector<16x256xf32> to vector<1x16x256xf32>
    %16 = vector.extract_strided_slice %15 {offsets = [0, 0, 0], sizes = [1, 16, 128], strides = [1, 1, 1]} : vector<1x16x256xf32> to vector<1x16x128xf32>
    %17 = vector.extract_strided_slice %15 {offsets = [0, 0, 128], sizes = [1, 16, 128], strides = [1, 1, 1]} : vector<1x16x256xf32> to vector<1x16x128xf32>
    %18 = arith.truncf %7 : vector<1x8x128xf32> to vector<1x8x128xbf16>
    %19 = arith.truncf %16 : vector<1x16x128xf32> to vector<1x16x128xbf16>
    "tpu.trace_start"() <{level = 10 : i32, message = "bsd,bld->bsl"}> : () -> ()
    %cst_14 = arith.constant dense<0.000000e+00> : vector<1x8x16xf32>
    %20 = tpu.matmul %18, %19, %cst_14 {dimension_numbers = #tpu.dot_dimension_numbers<[2], [2], [1], [1], [0, 0, 0, 1, 1, 1], [0], [0]>} : vector<1x8x128xbf16>, vector<1x16x128xbf16>, vector<1x8x16xf32> -> vector<1x8x16xf32>
    "tpu.trace_stop"() : () -> ()
    %c0_15 = arith.constant 0 : index
    %c0_16 = arith.constant 0 : index
    %c0_17 = arith.constant 0 : index
    %21 = vector.load %arg3[%c0_15, %c0_16, %c0_17] : memref<1x1x16xf32, #tpu.memory_space<vmem>>, vector<1x1x16xf32>
    %22 = vector.broadcast %21 : vector<1x1x16xf32> to vector<1x8x16xf32>
    %23 = arith.addf %20, %22 : vector<1x8x16xf32>
    %cst_18 = arith.constant dense<0xFF800000> : vector<1x8xf32>
    %24 = vector.multi_reduction <maximumf>, %23, %cst_18 [2] : vector<1x8x16xf32> to vector<1x8xf32>
    %25 = vector.shape_cast %24 : vector<1x8xf32> to vector<1x8x1xf32>
    %26 = vector.broadcast %25 : vector<1x8x1xf32> to vector<1x8x16xf32>
    %27 = arith.subf %23, %26 : vector<1x8x16xf32>
    %28 = math.exp %27 : vector<1x8x16xf32>
    %cst_19 = arith.constant dense<0.000000e+00> : vector<1x8xf32>
    %29 = vector.multi_reduction <add>, %28, %cst_19 [2] : vector<1x8x16xf32> to vector<1x8xf32>
    %30 = vector.shape_cast %29 : vector<1x8xf32> to vector<1x8x1xf32>
    %31 = tpu.reciprocal %30 {approx = true} : vector<1x8x1xf32> -> vector<1x8x1xf32>
    %c0_20 = arith.constant 0 : index
    %c0_21 = arith.constant 0 : index
    %32 = vector.load %arg4[%c0_20, %c0_21] : memref<8x1xf32, #tpu.memory_space<vmem>>, vector<8x1xf32>
    %33 = vector.shape_cast %32 : vector<8x1xf32> to vector<1x8x1xf32>
    %34 = arith.mulf %31, %33 : vector<1x8x1xf32>
    %35 = vector.broadcast %34 : vector<1x8x1xf32> to vector<1x8x16xf32>
    %36 = arith.mulf %28, %35 : vector<1x8x16xf32>
    %cst_22 = arith.constant dense<0.000000e+00> : vector<1x16xf32>
    %37 = vector.multi_reduction <add>, %36, %cst_22 [1] : vector<1x8x16xf32> to vector<1x16xf32>
    %38 = vector.shape_cast %37 : vector<1x16xf32> to vector<1x16x1xf32>
    %39 = vector.broadcast %38 : vector<1x16x1xf32> to vector<1x16x128xf32>
    %40 = arith.mulf %39, %17 : vector<1x16x128xf32>
    %cst_23 = arith.constant dense<0.000000e+00> : vector<1x128xf32>
    %41 = vector.multi_reduction <add>, %40, %cst_23 [1] : vector<1x16x128xf32> to vector<1x128xf32>
    %42 = arith.truncf %41 : vector<1x128xf32> to vector<1x128xbf16>
    %c0_24 = arith.constant 0 : index
    %c0_25 = arith.constant 0 : index
    %43 = vector.load %arg9[%c0_24, %c0_25] : memref<128x128xbf16, #tpu.memory_space<vmem>>, vector<128x128xbf16>
    %cst_26 = arith.constant dense<0.000000e+00> : vector<1x128xf32>
    %44 = tpu.matmul %42, %43, %cst_26 {dimension_numbers = #tpu.dot_dimension_numbers<[1], [0], [0], [1], [0, 0, 1, 1], [], []>} : vector<1x128xbf16>, vector<128x128xbf16>, vector<1x128xf32> -> vector<1x128xf32>
    %c0_27 = arith.constant 0 : index
    %c0_28 = arith.constant 0 : index
    %45 = vector.load %arg10[%c0_27, %c0_28] : memref<1x128xf32, #tpu.memory_space<vmem>>, vector<1x128xf32>
    %46 = arith.addf %44, %45 : vector<1x128xf32>
    %47 = vector.shape_cast %46 : vector<1x128xf32> to vector<1x1x128xf32>
    %c0_29 = arith.constant 0 : index
    %c0_30 = arith.constant 0 : index
    %c0_31 = arith.constant 0 : index
    %48 = vector.load %arg11[%c0_29, %c0_30, %c0_31] : memref<1x1x128xf32, #tpu.memory_space<vmem>>, vector<1x1x128xf32>
    tpu.vector_store %arg11[%c0_29, %c0_30, %c0_31], %47 {strides = array<i32>} : memref<1x1x128xf32, #tpu.memory_space<vmem>>, vector<1x1x128xf32>,
    return
  }
  func.func @transform_0(%arg0: i32) -> (i32, i32, i32) {
    %c0_i32 = arith.constant 0 : i32
    %c0_i32_0 = arith.constant 0 : i32
    %c0_i32_1 = arith.constant 0 : i32
    return %arg0, %c0_i32, %c0_i32_0 : i32, i32, i32
  }
  func.func @transform_1(%arg0: i32) -> (i32, i32, i32) {
    %c0_i32 = arith.constant 0 : i32
    %c0_i32_0 = arith.constant 0 : i32
    %c0_i32_1 = arith.constant 0 : i32
    return %arg0, %c0_i32, %c0_i32_0 : i32, i32, i32
  }
  func.func @transform_2(%arg0: i32) -> (i32, i32, i32) {
    %c0_i32 = arith.constant 0 : i32
    %c0_i32_0 = arith.constant 0 : i32
    %c0_i32_1 = arith.constant 0 : i32
    return %arg0, %c0_i32, %c0_i32_0 : i32, i32, i32
  }
  func.func @transform_3(%arg0: i32) -> (i32, i32) {
    %c0_i32 = arith.constant 0 : i32
    %c0_i32_0 = arith.constant 0 : i32
    %c0_i32_1 = arith.constant 0 : i32
    return %c0_i32, %c0_i32_0 : i32, i32
  }
  func.func @transform_4(%arg0: i32) -> (i32, i32) {
    %c0_i32 = arith.constant 0 : i32
    %c0_i32_0 = arith.constant 0 : i32
    %c0_i32_1 = arith.constant 0 : i32
    return %c0_i32, %c0_i32_0 : i32, i32
  }
  func.func @transform_5(%arg0: i32) -> (i32, i32) {
    %c0_i32 = arith.constant 0 : i32
    %c0_i32_0 = arith.constant 0 : i32
    %c0_i32_1 = arith.constant 0 : i32
    return %c0_i32, %c0_i32_0 : i32, i32
  }
  func.func @transform_6(%arg0: i32) -> (i32, i32) {
    %c0_i32 = arith.constant 0 : i32
    %c0_i32_0 = arith.constant 0 : i32
    %c0_i32_1 = arith.constant 0 : i32
    return %c0_i32, %c0_i32_0 : i32, i32
  }
  func.func @transform_7(%arg0: i32) -> (i32, i32) {
    %c0_i32 = arith.constant 0 : i32
    %c0_i32_0 = arith.constant 0 : i32
    %c0_i32_1 = arith.constant 0 : i32
    return %c0_i32, %c0_i32_0 : i32, i32
  }
  func.func @transform_8(%arg0: i32) -> (i32, i32) {
    %c0_i32 = arith.constant 0 : i32
    %c0_i32_0 = arith.constant 0 : i32
    %c0_i32_1 = arith.constant 0 : i32
    return %c0_i32, %c0_i32_0 : i32, i32
  }
  func.func @transform_9(%arg0: i32) -> (i32, i32) {
    %c0_i32 = arith.constant 0 : i32
    %c0_i32_0 = arith.constant 0 : i32
    %c0_i32_1 = arith.constant 0 : i32
    return %c0_i32, %c0_i32_0 : i32, i32
  }
  func.func @transform_10(%arg0: i32) -> (i32, i32, i32) {
    %c0_i32 = arith.constant 0 : i32
    %c0_i32_0 = arith.constant 0 : i32
    %c0_i32_1 = arith.constant 0 : i32
    return %arg0, %c0_i32, %c0_i32_0 : i32, i32, i32
  }
}

</mosaic_0001>

<llo_original>
// kernel: tpu_custom_call.1
$region0: #{tpu_custom_call.1}
  #allocation0 [shape = 'u32[]', space=smem, size = 0x4, offset = 0x4, fixed_abs, tag = 'smem constant byte address 0x4 - core index']
  #allocation1 [shape = 'u32[144,128]{1,0:T(1,128)}', space=vmem, size = 0x12000, scoped, tag = 'internal scratch']
  %s0 = inlined_call_operand.vmem [shape: bf16[2,8,128], index: 0, kind: input, shape index: {}]
  %s1 = inlined_call_operand.hbm [shape: bf16[2,16,128], index: 1, kind: input, shape index: {}]
  %s2 = inlined_call_operand.vmem [shape: f32[2,1,16], index: 2, kind: input, shape index: {}]
  %s3 = inlined_call_operand.vmem [shape: f32[8,1], index: 3, kind: input, shape index: {}]
  %s4 = inlined_call_operand.hbm [shape: bf16[128,128], index: 4, kind: input, shape index: {}]
  %s5 = inlined_call_operand.vmem [shape: f32[1,128], index: 5, kind: input, shape index: {}]
  %s6 = inlined_call_operand.hbm [shape: bf16[128,256], index: 6, kind: input, shape index: {}]
  %s7 = inlined_call_operand.vmem [shape: f32[1,256], index: 7, kind: input, shape index: {}]
  %s8 = inlined_call_operand.hbm [shape: bf16[128,128], index: 8, kind: input, shape index: {}]
  %s9 = inlined_call_operand.vmem [shape: f32[1,128], index: 9, kind: input, shape index: {}]
  %s10 = inlined_call_operand.hbm [shape: f32[2,1,128], index: 10, kind: output, shape index: {}]
  %s11 = sld [smem:[#allocation0]]
  $region89: #{tpu_custom_call.1} parent=0
    _
  %s13 = ssub.s32 1, %s11
  %s14 = scalar_select 0, %s13, %s11
  $region1: #{tpu_custom_call.1} parent=0
    #allocation2 [shape = 'u8[8192]{0}', space=vmem, size = 0x2000, scoped, tag = 'input window, operand 1']
    #allocation3 [shape = 's32[2]{0}', space=sflag, size = 0x8, scoped, tag = 'scoped memory for tpu_custom_call.1']
    #allocation4 [shape = 's32[2]{0}', space=sflag, size = 0x8, scoped, tag = 'scoped memory for tpu_custom_call.1']
    #allocation5 [shape = 'u8[32768]{0}', space=vmem, size = 0x8000, scoped, tag = 'input window, operand 4, single buffered']
    #allocation6 [shape = 's32[1]{0}', space=sflag, size = 0x4, scoped, tag = 'scoped memory for tpu_custom_call.1']
    #allocation7 [shape = 'u8[65536]{0}', space=vmem, size = 0x10000, scoped, tag = 'input window, operand 6, single buffered']
    #allocation8 [shape = 'u8[32768]{0}', space=vmem, size = 0x8000, scoped, tag = 'input window, operand 8, single buffered']
    #allocation9 [shape = 's32[1]{0}', space=sflag, size = 0x4, scoped, tag = 'scoped memory for tpu_custom_call.1']
    #allocation10 [shape = 'u8[1024]{0}', space=vmem, size = 0x400, scoped, tag = 'output window, operand 0']
    %15 = vsyncpa [#allocation3], 0
    %s16 = scalar_lea.sflag [#allocation3], 1
    %17 = vsyncpa %s16, 0
    %18 = vsyncpa [#allocation6], 0
    %19 = vsyncpa [#allocation9], 0
    %20 = vsyncpa [#allocation4], 0
    %s21 = scalar_lea.sflag [#allocation4], 1
    %22 = vsyncpa %s21, 0
    loop: start=0, step=1, limit=4
    $region2: #{tpu_custom_call.1} parent=1 // loop_pre_header
      _
    $region3: #{tpu_custom_call.1} parent=1 // loop_header
      %s24 = sphi 0, %s28
      %p25 = scmp.ge.s32.totalorder %s24, 4
      %s34 = sphi 0, %s36
      %s37 = sphi 0, %s34
      %s38 = sphi 0, %s37
      %s54 = sphi 0, %s38
      %s60 = sphi 0, %s62
      %s63 = sphi 0, %s60
      %s64 = sphi 0, %s63
      %s80 = sphi 0, %s64
      %s86 = sphi 0, %s88
      %s89 = sphi 0, %s86
      %s90 = sphi 0, %s89
      %s106 = sphi 0, %s90
      %s110 = sphi 0, %s110
      %s112 = sphi 0, %s110
      %s113 = sphi 0, %s112
      %s127 = sphi 0, %s113
      %s131 = sphi 0, %s131
      %s133 = sphi 0, %s131
      %s134 = sphi 0, %s133
      %s148 = sphi 0, %s134
      %s152 = sphi 0, %s152
      %s154 = sphi 0, %s152
      %s155 = sphi 0, %s154
      %s169 = sphi 0, %s155
      %s173 = sphi 0, %s173
      %s175 = sphi 0, %s173
      %s176 = sphi 0, %s175
      %s190 = sphi 0, %s176
      %s194 = sphi 0, %s194
      %s196 = sphi 0, %s194
      %s197 = sphi 0, %s196
      %s211 = sphi 0, %s197
      %s215 = sphi 0, %s215
      %s217 = sphi 0, %s215
      %s218 = sphi 0, %s217
      %s232 = sphi 0, %s218
      %s236 = sphi 0, %s236
      %s238 = sphi 0, %s236
      %s239 = sphi 0, %s238
      %s253 = sphi 0, %s239
      %s259 = sphi 0, %s261
      %s262 = sphi 0, %s259
      %s263 = sphi 0, %s262
      %s279 = sphi 0, %s263
    $region4: #{tpu_custom_call.1} parent=1 // loop_header_branch
      %27 = sbr.rel (%p25) target = $region8
    $region5: #{tpu_custom_call.1} parent=1 // loop_body
      %s29 = ssub.s32 %s24, 1
      %s30 = ssub.s32 %s24, 2
      %s31 = sadd.s32 %s24, 1
      %s32 = ssub.s32 %s24, %s31
      %p33 = scmp.eq.s32.totalorder %s32, 0
      %s35 = sadd.s32 %s34, 1
      %s36 = scalar_select %p33, %s34, %s35
      %p39 = pneg %p33
      %p40 = scmp.eq.s32.totalorder %s24, 1
      %p41 = por %p39, %p40
      %p42 = scmp.ne.s32.totalorder %s34, %s37
      %p43 = scmp.eq.s32.totalorder %s24, 0
      %p44 = por %p42, %p43
      %p45 = scmp.ne.s32.totalorder %s34, %s37
      %p46 = scmp.eq.s32.totalorder %s29, 1
      %p47 = por %p45, %p46
      %p48 = scmp.ne.s32.totalorder %s37, %s38
      %p49 = scmp.eq.s32.totalorder %s29, 0
      %p50 = por %p48, %p49
      %p51 = scmp.ne.s32.totalorder %s37, %s38
      %p52 = scmp.eq.s32.totalorder %s30, 1
      %p53 = por %p51, %p52
      %p55 = scmp.ne.s32.totalorder %s38, %s54
      %p56 = scmp.eq.s32.totalorder %s30, 0
      %p57 = por %p55, %p56
      %s58 = ssub.s32 %s24, %s31
      %p59 = scmp.eq.s32.totalorder %s58, 0
      %s61 = sadd.s32 %s60, 1
      %s62 = scalar_select %p59, %s60, %s61
      %p65 = pneg %p59
      %p66 = scmp.eq.s32.totalorder %s24, 1
      %p67 = por %p65, %p66
      %p68 = scmp.ne.s32.totalorder %s60, %s63
      %p69 = scmp.eq.s32.totalorder %s24, 0
      %p70 = por %p68, %p69
      %p71 = scmp.ne.s32.totalorder %s60, %s63
      %p72 = scmp.eq.s32.totalorder %s29, 1
      %p73 = por %p71, %p72
      %p74 = scmp.ne.s32.totalorder %s63, %s64
      %p75 = scmp.eq.s32.totalorder %s29, 0
      %p76 = por %p74, %p75
      %p77 = scmp.ne.s32.totalorder %s63, %s64
      %p78 = scmp.eq.s32.totalorder %s30, 1
      %p79 = por %p77, %p78
      %p81 = scmp.ne.s32.totalorder %s64, %s80
      %p82 = scmp.eq.s32.totalorder %s30, 0
      %p83 = por %p81, %p82
      %s84 = ssub.s32 %s24, %s31
      %p85 = scmp.eq.s32.totalorder %s84, 0
      %s87 = sadd.s32 %s86, 1
      %s88 = scalar_select %p85, %s86, %s87
      %p91 = pneg %p85
      %p92 = scmp.eq.s32.totalorder %s24, 1
      %p93 = por %p91, %p92
      %p94 = scmp.ne.s32.totalorder %s86, %s89
      %p95 = scmp.eq.s32.totalorder %s24, 0
      %p96 = por %p94, %p95
      %p97 = scmp.ne.s32.totalorder %s86, %s89
      %p98 = scmp.eq.s32.totalorder %s29, 1
      %p99 = por %p97, %p98
      %p100 = scmp.ne.s32.totalorder %s89, %s90
      %p101 = scmp.eq.s32.totalorder %s29, 0
      %p102 = por %p100, %p101
      %p103 = scmp.ne.s32.totalorder %s89, %s90
      %p104 = scmp.eq.s32.totalorder %s30, 1
      %p105 = por %p103, %p104
      %p107 = scmp.ne.s32.totalorder %s90, %s106
      %p108 = scmp.eq.s32.totalorder %s30, 0
      %p109 = por %p107, %p108
      %s111 = sadd.s32 %s110, 1
      %p114 = scmp.eq.s32.totalorder %s24, 1
      %p115 = scmp.ne.s32.totalorder %s110, %s112
      %p116 = scmp.eq.s32.totalorder %s24, 0
      %p117 = por %p115, %p116
      %p118 = scmp.ne.s32.totalorder %s110, %s112
      %p119 = scmp.eq.s32.totalorder %s29, 1
      %p120 = por %p118, %p119
      %p121 = scmp.ne.s32.totalorder %s112, %s113
      %p122 = scmp.eq.s32.totalorder %s29, 0
      %p123 = por %p121, %p122
      %p124 = scmp.ne.s32.totalorder %s112, %s113
      %p125 = scmp.eq.s32.totalorder %s30, 1
      %p126 = por %p124, %p125
      %p128 = scmp.ne.s32.totalorder %s113, %s127
      %p129 = scmp.eq.s32.totalorder %s30, 0
      %p130 = por %p128, %p129
      %s132 = sadd.s32 %s131, 1
      %p135 = scmp.eq.s32.totalorder %s24, 1
      %p136 = scmp.ne.s32.totalorder %s131, %s133
      %p137 = scmp.eq.s32.totalorder %s24, 0
      %p138 = por %p136, %p137
      %p139 = scmp.ne.s32.totalorder %s131, %s133
      %p140 = scmp.eq.s32.totalorder %s29, 1
      %p141 = por %p139, %p140
      %p142 = scmp.ne.s32.totalorder %s133, %s134
      %p143 = scmp.eq.s32.totalorder %s29, 0
      %p144 = por %p142, %p143
      %p145 = scmp.ne.s32.totalorder %s133, %s134
      %p146 = scmp.eq.s32.totalorder %s30, 1
      %p147 = por %p145, %p146
      %p149 = scmp.ne.s32.totalorder %s134, %s148
      %p150 = scmp.eq.s32.totalorder %s30, 0
      %p151 = por %p149, %p150
      %s153 = sadd.s32 %s152, 1
      %p156 = scmp.eq.s32.totalorder %s24, 1
      %p157 = scmp.ne.s32.totalorder %s152, %s154
      %p158 = scmp.eq.s32.totalorder %s24, 0
      %p159 = por %p157, %p158
      %p160 = scmp.ne.s32.totalorder %s152, %s154
      %p161 = scmp.eq.s32.totalorder %s29, 1
      %p162 = por %p160, %p161
      %p163 = scmp.ne.s32.totalorder %s154, %s155
      %p164 = scmp.eq.s32.totalorder %s29, 0
      %p165 = por %p163, %p164
      %p166 = scmp.ne.s32.totalorder %s154, %s155
      %p167 = scmp.eq.s32.totalorder %s30, 1
      %p168 = por %p166, %p167
      %p170 = scmp.ne.s32.totalorder %s155, %s169
      %p171 = scmp.eq.s32.totalorder %s30, 0
      %p172 = por %p170, %p171
      %s174 = sadd.s32 %s173, 1
      %p177 = scmp.eq.s32.totalorder %s24, 1
      %p178 = scmp.ne.s32.totalorder %s173, %s175
      %p179 = scmp.eq.s32.totalorder %s24, 0
      %p180 = por %p178, %p179
      %p181 = scmp.ne.s32.totalorder %s173, %s175
      %p182 = scmp.eq.s32.totalorder %s29, 1
      %p183 = por %p181, %p182
      %p184 = scmp.ne.s32.totalorder %s175, %s176
      %p185 = scmp.eq.s32.totalorder %s29, 0
      %p186 = por %p184, %p185
      %p187 = scmp.ne.s32.totalorder %s175, %s176
      %p188 = scmp.eq.s32.totalorder %s30, 1
      %p189 = por %p187, %p188
      %p191 = scmp.ne.s32.totalorder %s176, %s190
      %p192 = scmp.eq.s32.totalorder %s30, 0
      %p193 = por %p191, %p192
      %s195 = sadd.s32 %s194, 1
      %p198 = scmp.eq.s32.totalorder %s24, 1
      %p199 = scmp.ne.s32.totalorder %s194, %s196
      %p200 = scmp.eq.s32.totalorder %s24, 0
      %p201 = por %p199, %p200
      %p202 = scmp.ne.s32.totalorder %s194, %s196
      %p203 = scmp.eq.s32.totalorder %s29, 1
      %p204 = por %p202, %p203
      %p205 = scmp.ne.s32.totalorder %s196, %s197
      %p206 = scmp.eq.s32.totalorder %s29, 0
      %p207 = por %p205, %p206
      %p208 = scmp.ne.s32.totalorder %s196, %s197
      %p209 = scmp.eq.s32.totalorder %s30, 1
      %p210 = por %p208, %p209
      %p212 = scmp.ne.s32.totalorder %s197, %s211
      %p213 = scmp.eq.s32.totalorder %s30, 0
      %p214 = por %p212, %p213
      %s216 = sadd.s32 %s215, 1
      %p219 = scmp.eq.s32.totalorder %s24, 1
      %p220 = scmp.ne.s32.totalorder %s215, %s217
      %p221 = scmp.eq.s32.totalorder %s24, 0
      %p222 = por %p220, %p221
      %p223 = scmp.ne.s32.totalorder %s215, %s217
      %p224 = scmp.eq.s32.totalorder %s29, 1
      %p225 = por %p223, %p224
      %p226 = scmp.ne.s32.totalorder %s217, %s218
      %p227 = scmp.eq.s32.totalorder %s29, 0
      %p228 = por %p226, %p227
      %p229 = scmp.ne.s32.totalorder %s217, %s218
      %p230 = scmp.eq.s32.totalorder %s30, 1
      %p231 = por %p229, %p230
      %p233 = scmp.ne.s32.totalorder %s218, %s232
      %p234 = scmp.eq.s32.totalorder %s30, 0
      %p235 = por %p233, %p234
      %s237 = sadd.s32 %s236, 1
      %p240 = scmp.eq.s32.totalorder %s24, 1
      %p241 = scmp.ne.s32.totalorder %s236, %s238
      %p242 = scmp.eq.s32.totalorder %s24, 0
      %p243 = por %p241, %p242
      %p244 = scmp.ne.s32.totalorder %s236, %s238
      %p245 = scmp.eq.s32.totalorder %s29, 1
      %p246 = por %p244, %p245
      %p247 = scmp.ne.s32.totalorder %s238, %s239
      %p248 = scmp.eq.s32.totalorder %s29, 0
      %p249 = por %p247, %p248
      %p250 = scmp.ne.s32.totalorder %s238, %s239
      %p251 = scmp.eq.s32.totalorder %s30, 1
      %p252 = por %p250, %p251
      %p254 = scmp.ne.s32.totalorder %s239, %s253
      %p255 = scmp.eq.s32.totalorder %s30, 0
      %p256 = por %p254, %p255
      %s257 = ssub.s32 %s24, %s31
      %p258 = scmp.eq.s32.totalorder %s257, 0
      %s260 = sadd.s32 %s259, 1
      %s261 = scalar_select %p258, %s259, %s260
      %p264 = pneg %p258
      %p265 = scmp.eq.s32.totalorder %s24, 1
      %p266 = por %p264, %p265
      %p267 = scmp.ne.s32.totalorder %s259, %s262
      %p268 = scmp.eq.s32.totalorder %s24, 0
      %p269 = por %p267, %p268
      %p270 = scmp.ne.s32.totalorder %s259, %s262
      %p271 = scmp.eq.s32.totalorder %s29, 1
      %p272 = por %p270, %p271
      %p273 = scmp.ne.s32.totalorder %s262, %s263
      %p274 = scmp.eq.s32.totalorder %s29, 0
      %p275 = por %p273, %p274
      %p276 = scmp.ne.s32.totalorder %s262, %s263
      %p277 = scmp.eq.s32.totalorder %s30, 1
      %p278 = por %p276, %p277
      %p280 = scmp.ne.s32.totalorder %s263, %s279
      %p281 = scmp.eq.s32.totalorder %s30, 0
      %p282 = por %p280, %p281
      %p283 = scmp.le.s32.totalorder 1, %s24
      %p284 = scmp.lt.s32.totalorder %s24, 3
      %p285 = pnand %p283, %p284
      %p286 = pneg %p285
      // Predicated region
      $region9: #{tpu_custom_call.1} parent=5 // pred_check
        _
      $region10: #{tpu_custom_call.1} parent=5 // pred_check_branch
        %288 = sbr.rel (%p285) target = $region12
      $region11: #{tpu_custom_call.1} parent=5 // pred_region
        %s289 = ssub.s32 %s24, 1
        // Predicated region
        $region13: #{tpu_custom_call.1} parent=11 // pred_check
          %p290 = pneg %p123
        $region14: #{tpu_custom_call.1} parent=11 // pred_check_branch
          %292 = sbr.rel (%p290) target = $region16
        $region15: #{tpu_custom_call.1} parent=11 // pred_region
          _
        $region16: #{tpu_custom_call.1} parent=11 // pred_fallthru
          _
        // Predicated region
        $region17: #{tpu_custom_call.1} parent=11 // pred_check
          %p293 = pneg %p144
        $region18: #{tpu_custom_call.1} parent=11 // pred_check_branch
          %295 = sbr.rel (%p293) target = $region20
        $region19: #{tpu_custom_call.1} parent=11 // pred_region
          %s297 = ssub.s32 1024, 1024
          %298 = vsyncadd [#allocation6], %s297
          %s299 = sshll.u32 [#allocation5], 4
          %s300 = int_to_ptr.vmem [resolvable:$true] %s299
          %305 = dma.hbm_to_vmem [thread:$0]  %s4, 1024, %s300, [#allocation6], 64, 64, 4
        $region20: #{tpu_custom_call.1} parent=11 // pred_fallthru
          _
        // Predicated region
        $region21: #{tpu_custom_call.1} parent=11 // pred_check
          %p306 = pneg %p165
        $region22: #{tpu_custom_call.1} parent=11 // pred_check_branch
          %308 = sbr.rel (%p306) target = $region24
        $region23: #{tpu_custom_call.1} parent=11 // pred_region
          _
        $region24: #{tpu_custom_call.1} parent=11 // pred_fallthru
          _
        // Predicated region
        $region25: #{tpu_custom_call.1} parent=11 // pred_check
          %p309 = pneg %p186
        $region26: #{tpu_custom_call.1} parent=11 // pred_check_branch
          %311 = sbr.rel (%p309) target = $region28
        $region27: #{tpu_custom_call.1} parent=11 // pred_region
          %s313 = ssub.s32 2048, 2048
          %314 = vsyncadd [#allocation6], %s313
          %s315 = sshll.u32 [#allocation7], 4
          %s316 = int_to_ptr.vmem [resolvable:$true] %s315
          %321 = dma.hbm_to_vmem [thread:$0]  %s6, 2048, %s316, [#allocation6], 128, 128, 8
        $region28: #{tpu_custom_call.1} parent=11 // pred_fallthru
          _
        // Predicated region
        $region29: #{tpu_custom_call.1} parent=11 // pred_check
          %p322 = pneg %p207
        $region30: #{tpu_custom_call.1} parent=11 // pred_check_branch
          %324 = sbr.rel (%p322) target = $region32
        $region31: #{tpu_custom_call.1} parent=11 // pred_region
          _
        $region32: #{tpu_custom_call.1} parent=11 // pred_fallthru
          _
        // Predicated region
        $region33: #{tpu_custom_call.1} parent=11 // pred_check
          %p325 = pneg %p228
        $region34: #{tpu_custom_call.1} parent=11 // pred_check_branch
          %327 = sbr.rel (%p325) target = $region36
        $region35: #{tpu_custom_call.1} parent=11 // pred_region
          %s329 = ssub.s32 1024, 1024
          %330 = vsyncadd [#allocation9], %s329
          %s331 = sshll.u32 [#allocation8], 4
          %s332 = int_to_ptr.vmem [resolvable:$true] %s331
          %337 = dma.hbm_to_vmem [thread:$0]  %s8, 1024, %s332, [#allocation9], 64, 64, 4
        $region36: #{tpu_custom_call.1} parent=11 // pred_fallthru
          _
        // Predicated region
        $region37: #{tpu_custom_call.1} parent=11 // pred_check
          %p338 = pneg %p249
        $region38: #{tpu_custom_call.1} parent=11 // pred_check_branch
          %340 = sbr.rel (%p338) target = $region40
        $region39: #{tpu_custom_call.1} parent=11 // pred_region
          _
        $region40: #{tpu_custom_call.1} parent=11 // pred_fallthru
          _
      $region12: #{tpu_custom_call.1} parent=5 // pred_fallthru
        _
      %p341 = scmp.lt.s32.totalorder %s24, 2
      // Predicated region
      $region41: #{tpu_custom_call.1} parent=5 // pred_check
        %p342 = pneg %p341
      $region42: #{tpu_custom_call.1} parent=5 // pred_check_branch
        %344 = sbr.rel (%p342) target = $region44
      $region43: #{tpu_custom_call.1} parent=5 // pred_region
        // Predicated region
        $region45: #{tpu_custom_call.1} parent=43 // pred_check
          %p345 = pneg %p44
        $region46: #{tpu_custom_call.1} parent=43 // pred_check_branch
          %347 = sbr.rel (%p345) target = $region48
        $region47: #{tpu_custom_call.1} parent=43 // pred_region
          %p348 = scmp.lt.s32.totalorder %s24, 1
          %s349 = scalar_select %p348, %s24, 1
          %s350 = smul.addr %s349, 4
          %s351 = scalar_lea.vmem %s0, %s350
        $region48: #{tpu_custom_call.1} parent=43 // pred_fallthru
          _
        // Predicated region
        $region49: #{tpu_custom_call.1} parent=43 // pred_check
          %p352 = pneg %p70
        $region50: #{tpu_custom_call.1} parent=43 // pred_check_branch
          %354 = sbr.rel (%p352) target = $region52
        $region51: #{tpu_custom_call.1} parent=43 // pred_region
          %s355 = sand.u32 %s60, 1
          %s356 = scalar_lea.sflag [#allocation3], %s355
          %s357 = sand.u32 %s60, 1
          %s358 = smul.addr %s357, 8
          %s359 = scalar_lea.vmem [#allocation2], %s358
          %s361 = ssub.s32 128, 128
          %362 = vsyncadd %s356, %s361
          %s363 = smul.addr %s24, 2
          %s364 = smul.addr %s363, 64
          %s365 = scalar_lea.hbm %s1, %s364
          %s366 = sshll.u32 %s359, 4
          %s367 = int_to_ptr.vmem [resolvable:$true] %s366
          %372 = dma.hbm_to_vmem [thread:$0]  %s365, 128, %s367, %s356, 64, 64, 4
        $region52: #{tpu_custom_call.1} parent=43 // pred_fallthru
          _
        // Predicated region
        $region53: #{tpu_custom_call.1} parent=43 // pred_check
          %p373 = pneg %p96
        $region54: #{tpu_custom_call.1} parent=43 // pred_check_branch
          %375 = sbr.rel (%p373) target = $region56
        $region55: #{tpu_custom_call.1} parent=43 // pred_region
          %p376 = scmp.lt.s32.totalorder %s24, 1
          %s377 = scalar_select %p376, %s24, 1
          %s378 = scalar_lea.vmem %s2, %s377
        $region56: #{tpu_custom_call.1} parent=43 // pred_fallthru
          _
      $region44: #{tpu_custom_call.1} parent=5 // pred_fallthru
        _
      %p379 = scmp.le.s32.totalorder 1, %s24
      %p380 = scmp.lt.s32.totalorder %s24, 3
      %p381 = pnand %p379, %p380
      %p382 = pneg %p381
      // Predicated region
      $region57: #{tpu_custom_call.1} parent=5 // pred_check
        _
      $region58: #{tpu_custom_call.1} parent=5 // pred_check_branch
        %384 = sbr.rel (%p381) target = $region60
      $region59: #{tpu_custom_call.1} parent=5 // pred_region
        %s385 = ssub.s32 %s24, 1
        %s386 = sand.u32 %s63, 1
        %s387 = scalar_lea.sflag [#allocation3], %s386
        %s388 = sand.u32 %s63, 1
        %s389 = smul.addr %s388, 8
        %s390 = scalar_lea.vmem [#allocation2], %s389
        // Predicated region
        $region61: #{tpu_custom_call.1} parent=59 // pred_check
          %p391 = pneg %p76
        $region62: #{tpu_custom_call.1} parent=59 // pred_check_branch
          %393 = sbr.rel (%p391) target = $region64
        $region63: #{tpu_custom_call.1} parent=59 // pred_region
          %394 = dma.done %s387, 128
        $region64: #{tpu_custom_call.1} parent=59 // pred_fallthru
          _
        // Predicated region
        $region65: #{tpu_custom_call.1} parent=59 // pred_check
          %p395 = pneg %p144
        $region66: #{tpu_custom_call.1} parent=59 // pred_check_branch
          %397 = sbr.rel (%p395) target = $region68
        $region67: #{tpu_custom_call.1} parent=59 // pred_region
          %398 = dma.done [#allocation6], 1024
        $region68: #{tpu_custom_call.1} parent=59 // pred_fallthru
          _
        // Predicated region
        $region69: #{tpu_custom_call.1} parent=59 // pred_check
          %p399 = pneg %p186
        $region70: #{tpu_custom_call.1} parent=59 // pred_check_branch
          %401 = sbr.rel (%p399) target = $region72
        $region71: #{tpu_custom_call.1} parent=59 // pred_region
          %402 = dma.done [#allocation6], 2048
        $region72: #{tpu_custom_call.1} parent=59 // pred_fallthru
          _
        // Predicated region
        $region73: #{tpu_custom_call.1} parent=59 // pred_check
          %p403 = pneg %p228
        $region74: #{tpu_custom_call.1} parent=59 // pred_check_branch
          %405 = sbr.rel (%p403) target = $region76
        $region75: #{tpu_custom_call.1} parent=59 // pred_region
          %406 = dma.done [#allocation9], 1024
        $region76: #{tpu_custom_call.1} parent=59 // pred_fallthru
          _
        %p407 = scmp.lt.s32.totalorder %s29, 1
        %s408 = scalar_select %p407, %s29, 1
        %s409 = smul.addr %s408, 4
        %s410 = scalar_lea.vmem %s0, %s409
        %p411 = pneg %p50
        %p412 = pneg %p47
        %s413 = sand.u32 %s63, 1
        %s414 = scalar_lea.sflag [#allocation3], %s413
        %s415 = sand.u32 %s63, 1
        %s416 = smul.addr %s415, 8
        %s417 = scalar_lea.vmem [#allocation2], %s416
        %p418 = pneg %p76
        %p419 = pneg %p73
        %p420 = scmp.lt.s32.totalorder %s29, 1
        %s421 = scalar_select %p420, %s29, 1
        %s422 = scalar_lea.vmem %s2, %s421
        %p423 = pneg %p102
        %p424 = pneg %p99
        %p425 = pneg %p123
        %p426 = pneg %p120
        %p427 = pneg %p144
        %p428 = pneg %p141
        %p429 = pneg %p165
        %p430 = pneg %p162
        %p431 = pneg %p186
        %p432 = pneg %p183
        %p433 = pneg %p207
        %p434 = pneg %p204
        %p435 = pneg %p228
        %p436 = pneg %p225
        %p437 = pneg %p249
        %p438 = pneg %p246
        %p439 = pneg %p275
        %p440 = pneg %p272
        %s441 = sand.u32 %s262, 1
        %s442 = scalar_lea.sflag [#allocation4], %s441
        %s443 = sand.u32 %s262, 1
        %s444 = scalar_lea.vmem [#allocation10], %s443
        %p445 = scmp.lt.s32.totalorder %s29, 1
        %s446 = scalar_select %p445, %s29, 1
        %s447 = smul.addr %s446, 4
        %s448 = scalar_lea.vmem %s0, %s447
        %p449 = scmp.lt.s32.totalorder %s29, 1
        %s450 = scalar_select %p449, %s29, 1
        %s451 = scalar_lea.vmem %s2, %s450
        %v453 = vld [vmem:[%s448] sm:$0xf]
        %v454 = vld [vmem:[#allocation5] sm:$0xf]
        %v455 = vld [vmem:[#allocation5 + $0x4] sm:$0xf]
        %v456 = vld [vmem:[#allocation5 + $0x8] sm:$0xf]
        %v457 = vld [vmem:[#allocation5 + $0xc] sm:$0xf]
        %v458 = vld [vmem:[#allocation5 + $0x10] sm:$0xf]
        %v459 = vld [vmem:[#allocation5 + $0x14] sm:$0xf]
        %v460 = vld [vmem:[#allocation5 + $0x18] sm:$0xf]
        %v461 = vld [vmem:[#allocation5 + $0x1c] sm:$0xf]
        %v462 = vld [vmem:[#allocation5 + $0x20] sm:$0xf]
        %v463 = vld [vmem:[#allocation5 + $0x24] sm:$0xf]
        %v464 = vld [vmem:[#allocation5 + $0x28] sm:$0xf]
        %v465 = vld [vmem:[#allocation5 + $0x2c] sm:$0xf]
        %v466 = vld [vmem:[#allocation5 + $0x30] sm:$0xf]
        %v467 = vld [vmem:[#allocation5 + $0x34] sm:$0xf]
        %v468 = vld [vmem:[#allocation5 + $0x38] sm:$0xf]
        %v469 = vld [vmem:[#allocation5 + $0x3c] sm:$0xf]
        %v470 = vld [vmem:[%s5] sm:$0x1]
        %v472 = vlaneseq
        %v473 = vshrl.u32 %v472, 7
        %v474 = vsub.s32 0, %v473
        %v475 = vrot.slane %v470, %v474
        %v493 = vunpack.c.l.b16 %v454
        %v494 = vunpack.c.l.b16 %v455
        %v495 = vunpack.c.l.b16 %v456
        %v496 = vunpack.c.l.b16 %v457
        %v497 = vunpack.c.l.b16 %v458
        %v498 = vunpack.c.l.b16 %v459
        %v499 = vunpack.c.l.b16 %v460
        %v500 = vunpack.c.l.b16 %v461
        %v501 = vunpack.c.l.b16 %v462
        %v502 = vunpack.c.l.b16 %v463
        %v503 = vunpack.c.l.b16 %v464
        %v504 = vunpack.c.l.b16 %v465
        %v505 = vunpack.c.l.b16 %v466
        %v506 = vunpack.c.l.b16 %v467
        %v507 = vunpack.c.l.b16 %v468
        %v508 = vunpack.c.l.b16 %v469
        %v509 = vpack.c.b16 %v494, %v493
        %v510 = vpack.c.b16 %v496, %v495
        %v511 = vpack.c.b16 %v498, %v497
        %v512 = vpack.c.b16 %v500, %v499
        %v513 = vpack.c.b16 %v502, %v501
        %v514 = vpack.c.b16 %v504, %v503
        %v515 = vpack.c.b16 %v506, %v505
        %v516 = vpack.c.b16 %v508, %v507
        %525 = vmatprep.subr.bf16.mxu0 0
        %526 = vmatpush1.bf16.msra.mxu0 %v516
        %527 = vmatprep.subr.bf16.mxu0 0
        %528 = vmatpush1.bf16.msra.mxu0 %v515
        %529 = vmatprep.subr.bf16.mxu0 0
        %530 = vmatpush1.bf16.msra.mxu0 %v514
        %531 = vmatprep.subr.bf16.mxu0 0
        %532 = vmatpush1.bf16.msra.mxu0 %v513
        %533 = vmatprep.subr.bf16.mxu0 0
        %534 = vmatpush1.bf16.msra.mxu0 %v512
        %535 = vmatprep.subr.bf16.mxu0 0
        %536 = vmatpush1.bf16.msra.mxu0 %v511
        %537 = vmatprep.subr.bf16.mxu0 0
        %538 = vmatpush1.bf16.msra.mxu0 %v510
        %539 = vmatprep.subr.bf16.mxu0 0
        %540 = vmatpush1.bf16.msra.mxu0 %v509
        %541 = vmatprep.subr.bf16.mxu0 0
        %542 = vmatpush2.bf16.msra.mxu0 0
        %543 = vmatprep.subr.bf16.mxu0 0
        %544 = vmatpush2.bf16.msra.mxu0 0
        %545 = vmatprep.subr.bf16.mxu0 0
        %546 = vmatpush2.bf16.msra.mxu0 0
        %547 = vmatprep.subr.bf16.mxu0 0
        %548 = vmatpush2.bf16.msra.mxu0 0
        %549 = vmatprep.subr.bf16.mxu0 0
        %550 = vmatpush2.bf16.msra.mxu0 0
        %551 = vmatprep.subr.bf16.mxu0 0
        %552 = vmatpush2.bf16.msra.mxu0 0
        %553 = vmatprep.subr.bf16.mxu0 0
        %554 = vmatpush2.bf16.msra.mxu0 0
        %555 = vmatprep.subr.bf16.mxu0 0
        %556 = vmatpush2.bf16.msra.mxu0 0
        %557 = vmatprep.mubr.bf16.mxu0 0
        %558 = vmatmul.mubr.bf16.gmra.mxu0 %v453
        %v559 = vpop.f32.mrf.mxu0
        %v560 = vadd.f32 %v475, %v559
        %v561 = vpop.f32.mrf.mxu0
        %v562 = vpop.f32.mrf.mxu0
        %v563 = vpop.f32.mrf.mxu0
        %564 = vdwg.mxu0
        %v565 = vld [vmem:[%s390] sm:$0xf]
        %v566 = vld [vmem:[%s390 + $0x4] sm:$0xf]
        %v567 = vld [vmem:[#allocation7] sm:$0xff]
        %v568 = vld [vmem:[#allocation7 + $0x8] sm:$0xff]
        %v569 = vld [vmem:[#allocation7 + $0x10] sm:$0xff]
        %v570 = vld [vmem:[#allocation7 + $0x18] sm:$0xff]
        %v571 = vld [vmem:[#allocation7 + $0x20] sm:$0xff]
        %v572 = vld [vmem:[#allocation7 + $0x28] sm:$0xff]
        %v573 = vld [vmem:[#allocation7 + $0x30] sm:$0xff]
        %v574 = vld [vmem:[#allocation7 + $0x38] sm:$0xff]
        %v575 = vld [vmem:[#allocation7 + $0x40] sm:$0xff]
        %v576 = vld [vmem:[#allocation7 + $0x48] sm:$0xff]
        %v577 = vld [vmem:[#allocation7 + $0x50] sm:$0xff]
        %v578 = vld [vmem:[#allocation7 + $0x58] sm:$0xff]
        %v579 = vld [vmem:[#allocation7 + $0x60] sm:$0xff]
        %v580 = vld [vmem:[#allocation7 + $0x68] sm:$0xff]
        %v581 = vld [vmem:[#allocation7 + $0x70] sm:$0xff]
        %v582 = vld [vmem:[#allocation7 + $0x78] sm:$0xff]
        %v583 = vld [vmem:[%s7] sm:$0x3]
        %v585 = vlaneseq
        %v586 = vshrl.u32 %v585, 7
        %v587 = vsub.s32 0, %v586
        %v588 = vrot.slane %v583, %v587
        %v589 = vlaneseq
        %v590 = vshrl.u32 %v589, 7
        %v591 = vsub.s32 1, %v590
        %v592 = vrot.slane %v583, %v591
        %v597 = vunpack.c.l.b16 %v565
        %v598 = vunpack.c.l.b16 %v566
        %v599 = vpack.c.b16 %v598, %v597
        %v617 = vunpack.c.l.b16 %v567
        %v618 = vunpack.c.h.b16 %v567
        %v619 = vunpack.c.l.b16 %v568
        %v620 = vunpack.c.h.b16 %v568
        %v621 = vunpack.c.l.b16 %v569
        %v622 = vunpack.c.h.b16 %v569
        %v623 = vunpack.c.l.b16 %v570
        %v624 = vunpack.c.h.b16 %v570
        %v625 = vunpack.c.l.b16 %v571
        %v626 = vunpack.c.h.b16 %v571
        %v627 = vunpack.c.l.b16 %v572
        %v628 = vunpack.c.h.b16 %v572
        %v629 = vunpack.c.l.b16 %v573
        %v630 = vunpack.c.h.b16 %v573
        %v631 = vunpack.c.l.b16 %v574
        %v632 = vunpack.c.h.b16 %v574
        %v633 = vunpack.c.l.b16 %v575
        %v634 = vunpack.c.h.b16 %v575
        %v635 = vunpack.c.l.b16 %v576
        %v636 = vunpack.c.h.b16 %v576
        %v637 = vunpack.c.l.b16 %v577
        %v638 = vunpack.c.h.b16 %v577
        %v639 = vunpack.c.l.b16 %v578
        %v640 = vunpack.c.h.b16 %v578
        %v641 = vunpack.c.l.b16 %v579
        %v642 = vunpack.c.h.b16 %v579
        %v643 = vunpack.c.l.b16 %v580
        %v644 = vunpack.c.h.b16 %v580
        %v645 = vunpack.c.l.b16 %v581
        %v646 = vunpack.c.h.b16 %v581
        %v647 = vunpack.c.l.b16 %v582
        %v648 = vunpack.c.h.b16 %v582
        %v649 = vpack.c.b16 %v619, %v617
        %v650 = vpack.c.b16 %v620, %v618
        %v651 = vpack.c.b16 %v623, %v621
        %v652 = vpack.c.b16 %v624, %v622
        %v653 = vpack.c.b16 %v627, %v625
        %v654 = vpack.c.b16 %v628, %v626
        %v655 = vpack.c.b16 %v631, %v629
        %v656 = vpack.c.b16 %v632, %v630
        %v657 = vpack.c.b16 %v635, %v633
        %v658 = vpack.c.b16 %v636, %v634
        %v659 = vpack.c.b16 %v639, %v637
        %v660 = vpack.c.b16 %v640, %v638
        %v661 = vpack.c.b16 %v643, %v641
        %v662 = vpack.c.b16 %v644, %v642
        %v663 = vpack.c.b16 %v647, %v645
        %v664 = vpack.c.b16 %v648, %v646
        %681 = vmatprep.subr.bf16.mxu0 %v664
        %682 = vmatpush1.bf16.msra.mxu0 %v663
        %683 = vmatprep.subr.bf16.mxu0 %v662
        %684 = vmatpush1.bf16.msra.mxu0 %v661
        %685 = vmatprep.subr.bf16.mxu0 %v660
        %686 = vmatpush1.bf16.msra.mxu0 %v659
        %687 = vmatprep.subr.bf16.mxu0 %v658
        %688 = vmatpush1.bf16.msra.mxu0 %v657
        %689 = vmatprep.subr.bf16.mxu0 %v656
        %690 = vmatpush1.bf16.msra.mxu0 %v655
        %691 = vmatprep.subr.bf16.mxu0 %v654
        %692 = vmatpush1.bf16.msra.mxu0 %v653
        %693 = vmatprep.subr.bf16.mxu0 %v652
        %694 = vmatpush1.bf16.msra.mxu0 %v651
        %695 = vmatprep.subr.bf16.mxu0 %v650
        %696 = vmatpush1.bf16.msra.mxu0 %v649
        %697 = vmatprep.subr.bf16.mxu0 0
        %698 = vmatpush2.bf16.msra.mxu0 0
        %699 = vmatprep.subr.bf16.mxu0 0
        %700 = vmatpush2.bf16.msra.mxu0 0
        %701 = vmatprep.subr.bf16.mxu0 0
        %702 = vmatpush2.bf16.msra.mxu0 0
        %703 = vmatprep.subr.bf16.mxu0 0
        %704 = vmatpush2.bf16.msra.mxu0 0
        %705 = vmatprep.subr.bf16.mxu0 0
        %706 = vmatpush2.bf16.msra.mxu0 0
        %707 = vmatprep.subr.bf16.mxu0 0
        %708 = vmatpush2.bf16.msra.mxu0 0
        %709 = vmatprep.subr.bf16.mxu0 0
        %710 = vmatpush2.bf16.msra.mxu0 0
        %711 = vmatprep.subr.bf16.mxu0 0
        %712 = vmatpush2.bf16.msra.mxu0 0
        %713 = vmatprep.mubr.bf16.mxu0 0
        %714 = vmatmul.mubr.bf16.gmra.mxu0 %v599
        %v715 = vpop.f32.mrf.mxu0
        %v716 = vadd.f32 %v588, %v715
        %v717 = vpop.f32.mrf.mxu0
        %v718 = vadd.f32 %v592, %v717
        %v719 = vpop.f32.mrf.mxu0
        %v720 = vadd.f32 %v588, %v719
        %v721 = vpop.f32.mrf.mxu0
        %v722 = vadd.f32 %v592, %v721
        %723 = vdwg.mxu0
        %v724 = vpack.c.bf16 %v560, %v560
        %v725 = vpack.c.bf16 %v720, %v716
        %v726 = vld [vmem:[%s451] sm:$0x1]
        %v728 = vlaneseq
        %v729 = vshrl.u32 %v728, 7
        %v730 = vsub.s32 0, %v729
        %v731 = vrot.slane %v726, %v730
        %733 = vmatprep.subr.bf16.mxu0 0
        %734 = vmatpush1.bf16.xpose.msra.mxu0 0
        %735 = vmatprep.subr.bf16.mxu0 0
        %736 = vmatpush1.bf16.xpose.msra.mxu0 0
        %737 = vmatprep.subr.bf16.mxu0 0
        %738 = vmatpush1.bf16.xpose.msra.mxu0 0
        %739 = vmatprep.subr.bf16.mxu0 0
        %740 = vmatpush1.bf16.xpose.msra.mxu0 0
        %741 = vmatprep.subr.bf16.mxu0 0
        %742 = vmatpush1.bf16.xpose.msra.mxu0 0
        %743 = vmatprep.subr.bf16.mxu0 0
        %744 = vmatpush1.bf16.xpose.msra.mxu0 0
        %745 = vmatprep.subr.bf16.mxu0 0
        %746 = vmatpush1.bf16.xpose.msra.mxu0 0
        %747 = vmatprep.subr.bf16.mxu0 0
        %748 = vmatpush1.bf16.xpose.msra.mxu0 %v725
        %749 = vmatprep.subr.bf16.mxu0 0
        %750 = vmatpush2.bf16.xpose.msra.mxu0 0
        %751 = vmatprep.subr.bf16.mxu0 0
        %752 = vmatpush2.bf16.xpose.msra.mxu0 0
        %753 = vmatprep.subr.bf16.mxu0 0
        %754 = vmatpush2.bf16.xpose.msra.mxu0 0
        %755 = vmatprep.subr.bf16.mxu0 0
        %756 = vmatpush2.bf16.xpose.msra.mxu0 0
        %757 = vmatprep.subr.bf16.mxu0 0
        %758 = vmatpush2.bf16.xpose.msra.mxu0 0
        %759 = vmatprep.subr.bf16.mxu0 0
        %760 = vmatpush2.bf16.xpose.msra.mxu0 0
        %761 = vmatprep.subr.bf16.mxu0 0
        %762 = vmatpush2.bf16.xpose.msra.mxu0 0
        %763 = vmatprep.subr.bf16.mxu0 0
        %764 = vmatpush2.bf16.xpose.msra.mxu0 0
        %765 = vmatprep.mubr.bf16.mxu0 0
        %766 = vmatmul.mubr.bf16.gmra.mxu0 %v724
        %v767 = vpop.f32.mrf.mxu0
        %v768 = vadd.f32 %v731, %v767
        %v769 = vpop.f32.mrf.mxu0
        %v770 = vpop.f32.mrf.mxu0
        %v771 = vpop.f32.mrf.mxu0
        %772 = vdwg.mxu0
        %vm773 = vcmask 130048
        %v774 = vsel %vm773, %v768, -inf
        %775 = vmax.xlane.f32.xlu0 %v774
        %v776 = vpop.xlane.xlu0 %775
        %v777 = vsub.f32 %v768, %v776
        %v778 = vmul.f32 %v777, 1.442695
        %v779 = vpow.pop %v778
        %v780 = vsel %vm773, %v779, 0.0
        %781 = vadd.xlane.f32.xlu0 %v780
        %v782 = vpop.xlane.xlu0 %781
        %v783 = vrcp.pop %v782
        %v784 = vld [vmem:[%s3] sm:$0xff]
        %v785 = vmul.f32 %v783, %v784
        %787 = vset.pattern.permute.xlu0 0
        %788 = vperm.xlu0 %787, %v785
        %v789 = vpop.permute.xlu0 %788
        %v791 = vmul.f32 %v779, %v789
        %v792 = vsel %vm773, %v791, 0.0
        %v793 = vrot.slane %v792, 4
        %v794 = vadd.f32 %v792, %v793
        %v795 = vrot.slane %v794, 2
        %v796 = vadd.f32 %v794, %v795
        %v797 = vrot.slane %v796, 1
        %v798 = vadd.f32 %v796, %v797
        %800 = vbcast.lane.b32.xlu0 %v798, 256
        %v801 = vpop.permute.xlu0 %800
        %s803 = sor.u32 256, 8
        %804 = vbcast.lane.b32.xlu0 %v798, %s803
        %v805 = vpop.permute.xlu0 %804
        %v806 = vmul.f32 %v801, %v718
        %v807 = vmul.f32 %v805, %v722
        %v808 = vadd.f32 %v806, %v807
        %v809 = vrot.slane %v808, 4
        %v810 = vadd.f32 %v808, %v809
        %v811 = vrot.slane %v810, 2
        %v812 = vadd.f32 %v810, %v811
        %v813 = vrot.slane %v812, 1
        %v814 = vadd.f32 %v812, %v813
        %v815 = vpack.c.bf16 %v814, %v814
        %v816 = vld [vmem:[#allocation8] sm:$0xf]
        %v817 = vld [vmem:[#allocation8 + $0x4] sm:$0xf]
        %v818 = vld [vmem:[#allocation8 + $0x8] sm:$0xf]
        %v819 = vld [vmem:[#allocation8 + $0xc] sm:$0xf]
        %v820 = vld [vmem:[#allocation8 + $0x10] sm:$0xf]
        %v821 = vld [vmem:[#allocation8 + $0x14] sm:$0xf]
        %v822 = vld [vmem:[#allocation8 + $0x18] sm:$0xf]
        %v823 = vld [vmem:[#allocation8 + $0x1c] sm:$0xf]
        %v824 = vld [vmem:[#allocation8 + $0x20] sm:$0xf]
        %v825 = vld [vmem:[#allocation8 + $0x24] sm:$0xf]
        %v826 = vld [vmem:[#allocation8 + $0x28] sm:$0xf]
        %v827 = vld [vmem:[#allocation8 + $0x2c] sm:$0xf]
        %v828 = vld [vmem:[#allocation8 + $0x30] sm:$0xf]
        %v829 = vld [vmem:[#allocation8 + $0x34] sm:$0xf]
        %v830 = vld [vmem:[#allocation8 + $0x38] sm:$0xf]
        %v831 = vld [vmem:[#allocation8 + $0x3c] sm:$0xf]
        %v832 = vld [vmem:[%s9] sm:$0x1]
        %v849 = vunpack.c.l.b16 %v816
        %v850 = vunpack.c.l.b16 %v817
        %v851 = vunpack.c.l.b16 %v818
        %v852 = vunpack.c.l.b16 %v819
        %v853 = vunpack.c.l.b16 %v820
        %v854 = vunpack.c.l.b16 %v821
        %v855 = vunpack.c.l.b16 %v822
        %v856 = vunpack.c.l.b16 %v823
        %v857 = vunpack.c.l.b16 %v824
        %v858 = vunpack.c.l.b16 %v825
        %v859 = vunpack.c.l.b16 %v826
        %v860 = vunpack.c.l.b16 %v827
        %v861 = vunpack.c.l.b16 %v828
        %v862 = vunpack.c.l.b16 %v829
        %v863 = vunpack.c.l.b16 %v830
        %v864 = vunpack.c.l.b16 %v831
        %v865 = vpack.c.b16 %v850, %v849
        %v866 = vpack.c.b16 %v852, %v851
        %v867 = vpack.c.b16 %v854, %v853
        %v868 = vpack.c.b16 %v856, %v855
        %v869 = vpack.c.b16 %v858, %v857
        %v870 = vpack.c.b16 %v860, %v859
        %v871 = vpack.c.b16 %v862, %v861
        %v872 = vpack.c.b16 %v864, %v863
        %881 = vmatprep.subr.bf16.mxu0 0
        %882 = vmatpush1.bf16.msra.mxu0 %v872
        %883 = vmatprep.subr.bf16.mxu0 0
        %884 = vmatpush1.bf16.msra.mxu0 %v871
        %885 = vmatprep.subr.bf16.mxu0 0
        %886 = vmatpush1.bf16.msra.mxu0 %v870
        %887 = vmatprep.subr.bf16.mxu0 0
        %888 = vmatpush1.bf16.msra.mxu0 %v869
        %889 = vmatprep.subr.bf16.mxu0 0
        %890 = vmatpush1.bf16.msra.mxu0 %v868
        %891 = vmatprep.subr.bf16.mxu0 0
        %892 = vmatpush1.bf16.msra.mxu0 %v867
        %893 = vmatprep.subr.bf16.mxu0 0
        %894 = vmatpush1.bf16.msra.mxu0 %v866
        %895 = vmatprep.subr.bf16.mxu0 0
        %896 = vmatpush1.bf16.msra.mxu0 %v865
        %897 = vmatprep.subr.bf16.mxu0 0
        %898 = vmatpush2.bf16.msra.mxu0 0
        %899 = vmatprep.subr.bf16.mxu0 0
        %900 = vmatpush2.bf16.msra.mxu0 0
        %901 = vmatprep.subr.bf16.mxu0 0
        %902 = vmatpush2.bf16.msra.mxu0 0
        %903 = vmatprep.subr.bf16.mxu0 0
        %904 = vmatpush2.bf16.msra.mxu0 0
        %905 = vmatprep.subr.bf16.mxu0 0
        %906 = vmatpush2.bf16.msra.mxu0 0
        %907 = vmatprep.subr.bf16.mxu0 0
        %908 = vmatpush2.bf16.msra.mxu0 0
        %909 = vmatprep.subr.bf16.mxu0 0
        %910 = vmatpush2.bf16.msra.mxu0 0
        %911 = vmatprep.subr.bf16.mxu0 0
        %912 = vmatpush2.bf16.msra.mxu0 0
        %913 = vmatprep.mubr.bf16.mxu0 0
        %914 = vmatmul.mubr.bf16.gmra.mxu0 %v815
        %v915 = vpop.f32.mrf.mxu0
        %v916 = vadd.f32 %v832, %v915
        %v917 = vpop.f32.mrf.mxu0
        %v918 = vpop.f32.mrf.mxu0
        %v919 = vpop.f32.mrf.mxu0
        %920 = vdwg.mxu0
        %921 = vst [vmem:[%s444] sm:$0x1] %v916
        %s922 = sand.u32 %s262, 1
        %s923 = scalar_lea.sflag [#allocation4], %s922
        %s924 = sand.u32 %s262, 1
        %s925 = scalar_lea.vmem [#allocation10], %s924
        // Predicated region
        $region77: #{tpu_custom_call.1} parent=59 // pred_check
          %p926 = pneg %p272
        $region78: #{tpu_custom_call.1} parent=59 // pred_check_branch
          %928 = sbr.rel (%p926) target = $region80
        $region79: #{tpu_custom_call.1} parent=59 // pred_region
          %s930 = ssub.s32 16, 16
          %931 = vsyncadd %s923, %s930
          %s932 = smul.addr %s29, 16
          %s933 = scalar_lea.hbm %s10, %s932
          %s935 = sshll.u32 %s925, 4
          %s936 = int_to_ptr.vmem [resolvable:$true] %s935
          %938 = dma.vmem_to_hbm [thread:$0]  %s936, 16, %s933, %s923
        $region80: #{tpu_custom_call.1} parent=59 // pred_fallthru
          _
      $region60: #{tpu_custom_call.1} parent=5 // pred_fallthru
        _
      %p939 = scmp.le.s32.totalorder 2, %s24
      // Predicated region
      $region81: #{tpu_custom_call.1} parent=5 // pred_check
        %p940 = pneg %p939
      $region82: #{tpu_custom_call.1} parent=5 // pred_check_branch
        %942 = sbr.rel (%p940) target = $region84
      $region83: #{tpu_custom_call.1} parent=5 // pred_region
        %s943 = ssub.s32 %s24, 2
        // Predicated region
        $region85: #{tpu_custom_call.1} parent=83 // pred_check
          %p944 = pneg %p278
        $region86: #{tpu_custom_call.1} parent=83 // pred_check_branch
          %946 = sbr.rel (%p944) target = $region88
        $region87: #{tpu_custom_call.1} parent=83 // pred_region
          %s947 = sand.u32 %s263, 1
          %s948 = scalar_lea.sflag [#allocation4], %s947
          %s949 = sand.u32 %s263, 1
          %s950 = scalar_lea.vmem [#allocation10], %s949
          %951 = dma.done %s948, 16
        $region88: #{tpu_custom_call.1} parent=83 // pred_fallthru
          _
      $region84: #{tpu_custom_call.1} parent=5 // pred_fallthru
        _
    $region6: #{tpu_custom_call.1} parent=1 // loop_footer
      %s28 = sadd.s32 1, %s24
    $region7: #{tpu_custom_call.1} parent=1 // loop_footer_branch
      %23 = sbr.rel target = $region3
    $region8: #{tpu_custom_call.1} parent=1 // loop_exit
      _
    %952 = vsyncpa [#allocation3], 1
    %s953 = scalar_lea.sflag [#allocation3], 1
    %954 = vsyncpa %s953, 1
    %955 = vsyncpa [#allocation6], 1
    %956 = vsyncpa [#allocation9], 1
    %957 = vsyncpa [#allocation4], 1
    %s958 = scalar_lea.sflag [#allocation4], 1
    %959 = vsyncpa %s958, 1

</llo_original>
